<compile_context>
chip_gen: v7x
topology: tpu7x:2x2x1
jax: 0.10.0
libtpu: 0.0.40
codegen_flags: <defaults>
</compile_context>

<pallas_src>
import functools

import jax
import jax.numpy as jnp
from jax.experimental import pallas as pl
from jax.experimental.pallas import tpu as pltpu


# ----------------------------------------------------------------------------
# helpers
# ----------------------------------------------------------------------------
def _block(dim, align, target):
    """Block size: full dim when small, otherwise a fixed `align`-multiple.

    Never returns an over-sized whole-array block for big dims; remainders are
    handled by pl.cdiv grids + Pallas edge masking."""
    if dim <= target:
        return dim                       # full dim is always a legal block
    return max(align, (target // align) * align)


# ----------------------------------------------------------------------------
# Kernel 1: image normalization   2 * (x / 255) - 1   (cast done in-kernel)
# ----------------------------------------------------------------------------
def _normalize_kernel(x1_ref, x2_ref, o1_ref, o2_ref):
    o1_ref[...] = x1_ref[...].astype(jnp.float32) * (2.0 / 255.0) - 1.0
    o2_ref[...] = x2_ref[...].astype(jnp.float32) * (2.0 / 255.0) - 1.0


def normalize_image_pair(img1, img2):
    """Both images normalized by one tiled, lane-dense pallas_call (no stack)."""
    assert img1.shape == img2.shape and img1.dtype == img2.dtype
    shape = img1.shape
    total = 1
    for d in shape:
        total *= d

    # Lane-dense layout: (rows, lane) with lane a multiple of 128.
    lane = 512
    while lane > 128 and total % lane:
        lane //= 2
    pad = (-total) % lane                      # rare: only if total % 128 != 0
    rows = (total + pad) // lane

    def flat(x):
        x = x.reshape(-1)
        if pad:
            x = jnp.pad(x, (0, pad))
        return x.reshape(rows, lane)

    x1, x2 = flat(img1), flat(img2)
    br = _block(rows, 32, 512)                 # 32-sublane align covers uint8
    grid = (pl.cdiv(rows, br),)

    o1, o2 = pl.pallas_call(
        _normalize_kernel,
        out_shape=(jax.ShapeDtypeStruct((rows, lane), jnp.float32),
                   jax.ShapeDtypeStruct((rows, lane), jnp.float32)),
        grid=grid,
        in_specs=[pl.BlockSpec((br, lane), lambda i: (i, 0)),
                  pl.BlockSpec((br, lane), lambda i: (i, 0))],
        out_specs=[pl.BlockSpec((br, lane), lambda i: (i, 0)),
                   pl.BlockSpec((br, lane), lambda i: (i, 0))],
        compiler_params=pltpu.CompilerParams(
            dimension_semantics=("parallel",)),
    )(x1, x2)

    def unflat(o):
        o = o.reshape(-1)
        if pad:
            o = o[:total]
        return o.reshape(shape)

    return unflat(o1), unflat(o2)


# ----------------------------------------------------------------------------
# Kernel 2: convex-combination flow upsampling, RAW (pre pixel-shuffle) layout
#   out[n, c, sy*s+sx, h, w] = sum_k softmax_k(mask) * s*flow_neighborhood_k
#   Tiled over (N, H-tiles, W-tiles); 3x3 unfold done in-kernel from a small
#   halo'd flow tile; mask cast in-VMEM; exact softmax.
# ----------------------------------------------------------------------------
def _upsample_raw_kernel(flow_ref, mask_ref, out_ref, *, scale):
    P = scale * scale
    TH = out_ref.shape[3]
    TW = out_ref.shape[4]

    m = mask_ref[0].astype(jnp.float32).reshape(9, P, TH, TW)
    m_max = jnp.max(m, axis=0)                                  # (P, TH, TW)
    fl = flow_ref[0, 0, 0].astype(jnp.float32) * float(scale)   # (2,TH+2,TW+2)

    acc = jnp.zeros((2, P, TH, TW), jnp.float32)
    denom = jnp.zeros((P, TH, TW), jnp.float32)
    k = 0
    for ky in range(3):                                         # static unroll
        for kx in range(3):
            e_k = jnp.exp(m[k] - m_max)                         # (P, TH, TW)
            f_k = fl[:, ky:ky + TH, kx:kx + TW]                 # (2, TH, TW)
            denom = denom + e_k
            acc = acc + e_k[None] * f_k[:, None]
            k += 1

    out_ref[0] = acc / denom[None]                              # exact softmax


def upsample_flow_raw(flow, mask, scale=2):
    """[N,2,H,W] -> raw (N, 2, scale*scale, H, W) convex-upsample values."""
    N, C, H, W = flow.shape
    assert C == 2
    P = scale * scale
    mask = mask.reshape(N, 9 * P, H, W)        # native dtype; cast in-kernel

    TH = _block(H, 8, 128)
    TW = _block(W, 128, 128)
    n_h = pl.cdiv(H, TH)
    n_w = pl.cdiv(W, TW)

    # Small halo'd flow tiles (flow is tiny vs the mask), so all in-kernel
    # slices stay static and VMEM per step stays bounded on every generation.
    fp = jnp.pad(flow.astype(jnp.float32),
                 ((0, 0), (0, 0), (1, 1 + n_h * TH - H), (1, 1 + n_w * TW - W)))
    rows = []
    for ih in range(n_h):
        cols = [fp[:, :, ih * TH: ih * TH + TH + 2, iw * TW: iw * TW + TW + 2]
                for iw in range(n_w)]
        rows.append(jnp.stack(cols, axis=1))
    flow_tiles = jnp.stack(rows, axis=1)       # (N, n_h, n_w, 2, TH+2, TW+2)

    out = pl.pallas_call(
        functools.partial(_upsample_raw_kernel, scale=scale),
        out_shape=jax.ShapeDtypeStruct((N, 2, P, H, W), jnp.float32),
        grid=(N, n_h, n_w),
        in_specs=[
            pl.BlockSpec((1, 1, 1, 2, TH + 2, TW + 2),
                         lambda n, ih, iw: (n, ih, iw, 0, 0, 0)),
            pl.BlockSpec((1, 9 * P, TH, TW), lambda n, ih, iw: (n, 0, ih, iw)),
        ],
        out_specs=pl.BlockSpec((1, 2, P, TH, TW),
                               lambda n, ih, iw: (n, 0, 0, ih, iw)),
        compiler_params=pltpu.CompilerParams(
            dimension_semantics=("parallel", "parallel", "parallel"),
            vmem_limit_bytes=48 * 1024 * 1024),
    )(flow_tiles, mask)
    return out


# ----------------------------------------------------------------------------
# Kernel 3: fused separable bilinear resize (align_corners=True) of a
#           pixel-shuffle-packed source.  Row pass + column pass + per-channel
#           rescale in ONE kernel; the pixel shuffle is absorbed into the
#           (column-sliced) interpolation matrices, never materialized in HBM.
# ----------------------------------------------------------------------------
def _resize_kernel(x_ref, wy_ref, wx_ref, o_ref, *, s):
    # x_ref : (1, 1, s*s, H0, W0)   one source channel (VMEM-resident)
    # wy_ref: (s, TH, H0)           row-interp slices for this output row tile
    # wx_ref: (1, s, W0, NW)        col-interp slices, per-channel scale folded
    acc = None
    for sy in range(s):
        for sx in range(s):
            t = jnp.dot(wy_ref[sy], x_ref[0, 0, sy * s + sx],
                        preferred_element_type=jnp.float32)      # (TH, W0)
            c = jnp.dot(t, wx_ref[0, sx],
                        preferred_element_type=jnp.float32)      # (TH, NW)
            acc = c if acc is None else acc + c
    o_ref[0, 0] = acc


def _bilinear_matrix(out_size, in_size):
    """Row-stochastic interpolation matrix, PyTorch bilinear align_corners=True.

    For out_size == in_size this degenerates to the exact identity matrix."""
    # TODO(synk): out_size == 1 degenerate case samples index 0 only; verify
    # against PyTorch align_corners=True for 1-pixel outputs.
    if out_size == 1:
        src = jnp.zeros((1,), jnp.float32)
    else:
        src = jnp.arange(out_size, dtype=jnp.float32) * (
            (in_size - 1) / (out_size - 1))
    lo = jnp.clip(jnp.floor(src), 0, in_size - 1).astype(jnp.int32)
    hi = jnp.clip(lo + 1, 0, in_size - 1)
    w = src - lo.astype(jnp.float32)
    return (jax.nn.one_hot(lo, in_size, dtype=jnp.float32) * (1.0 - w)[:, None]
            + jax.nn.one_hot(hi, in_size, dtype=jnp.float32) * w[:, None])


def _resize_from_raw(src, s, new_h, new_w, ch_scales):
    """src: (N, C, s*s, H0, W0) with true[n,c,h*s+sy,w*s+sx] = src[n,c,sy*s+sx,h,w]
    (s == 1 means src is already in true layout).  Returns (N, C, new_h, new_w)."""
    N, C, S2, H0, W0 = src.shape
    assert S2 == s * s and len(ch_scales) == C
    true_h, true_w = s * H0, s * W0

    wy = _bilinear_matrix(new_h, true_h)                       # (new_h, s*H0)
    wx = _bilinear_matrix(new_w, true_w)                       # (new_w, s*W0)
    wyS = jnp.stack([wy[:, sy::s] for sy in range(s)])         # (s, new_h, H0)
    wxS = jnp.stack([wx[:, sx::s].T for sx in range(s)])       # (s, W0, new_w)

    scales = [float(c) for c in ch_scales]
    if all(sc == scales[0] for sc in scales):
        wxC = (wxS * scales[0])[None]                          # (1, s, W0, NW)
        wx_idx = lambda n, c, i: (0, 0, 0, 0)
    else:
        wxC = jnp.stack([wxS * sc for sc in scales])           # (C, s, W0, NW)
        wx_idx = lambda n, c, i: (c, 0, 0, 0)

    TH = _block(new_h, 8, 256)
    n_h = pl.cdiv(new_h, TH)

    out = pl.pallas_call(
        functools.partial(_resize_kernel, s=s),
        out_shape=jax.ShapeDtypeStruct((N, C, new_h, new_w), jnp.float32),
        grid=(N, C, n_h),
        in_specs=[
            # same block index across the inner row-tile axis -> VMEM resident
            pl.BlockSpec((1, 1, S2, H0, W0), lambda n, c, i: (n, c, 0, 0, 0)),
            pl.BlockSpec((s, TH, H0), lambda n, c, i: (0, i, 0)),
            pl.BlockSpec((1, s, W0, new_w), wx_idx),
        ],
        out_specs=pl.BlockSpec((1, 1, TH, new_w), lambda n, c, i: (n, c, i, 0)),
        compiler_params=pltpu.CompilerParams(
            dimension_semantics=("parallel", "parallel", "parallel"),
            vmem_limit_bytes=48 * 1024 * 1024),
    )(src.astype(jnp.float32), wyS, wxC)
    return out


# ----------------------------------------------------------------------------
# Public ops built on the two kernels above
# ----------------------------------------------------------------------------
def upsample_flow(flow, mask, scale=2):
    """[N,2,H,W] -> [N,2,scale*H,scale*W] via learned convex combination.
    The pixel shuffle is done with exact 0/1 (identity) matrices on the MXU —
    no XLA transpose, lane-dense output."""
    N, C, H, W = flow.shape
    raw = upsample_flow_raw(flow, mask, scale)
    return _resize_from_raw(raw, scale, scale * H, scale * W, (1.0,) * C)


def bilinear_resize_scaled(flow, new_h, new_w, ch_scales):
    N, C, H, W = flow.shape
    return _resize_from_raw(flow.reshape(N, C, 1, H, W), 1, new_h, new_w,
                            ch_scales)


def downflow(flow, factor=0.125):
    """F.interpolate(bilinear, align_corners=True) then rescale (u, v) channels."""
    N, C, H, W = flow.shape
    new_h, new_w = int(factor * H), int(factor * W)
    return bilinear_resize_scaled(flow, new_h, new_w, (new_w / W, new_h / H))


def upflow2(flow):
    # TODO(synk): `upflow2` is not defined in the provided source; using the
    # standard RAFT-family definition: 2 * interpolate(scale=2, bilinear,
    # align_corners=True).
    N, C, H, W = flow.shape
    return bilinear_resize_scaled(flow, 2 * H, 2 * W, (2.0, 2.0))


def coords_grid(N, H, W):
    ys, xs = jnp.meshgrid(jnp.arange(H, dtype=jnp.float32),
                          jnp.arange(W, dtype=jnp.float32), indexing="ij")
    coords = jnp.stack([xs, ys], axis=0)               # (2, H, W): [x, y]
    return jnp.broadcast_to(coords[None], (N, 2, H, W))


# ----------------------------------------------------------------------------
# CCMR wrapper (Pallas-backed portions of the forward pass)
# ----------------------------------------------------------------------------
class CCMRPallas:
    def __init__(self, model_type="ccmr"):
        self.correlation_depth = 162
        self.hidden_dim = 128
        self.context_dim = 128
        if model_type.casefold() == "ccmr":
            self.num_scales = 3
        elif model_type.casefold() == "ccmr+":
            self.num_scales = 4
        else:
            raise ValueError(f'Model type "{model_type}" Unknown.')
        # TODO(synk): BasicEncoder_resconv / Basic_Context_Encoder_resconv /
        # XCiT / BasicUpdateBlock / CorrBlock definitions are not provided in
        # the source, so the recurrent GRU refinement loop cannot be reproduced.

    def initialize_flow16(self, img):
        N, C, H, W = img.shape
        return coords_grid(N, H // 16, W // 16), coords_grid(N, H // 16, W // 16)

    def upsample_flow(self, flow, mask, scale=8):
        return upsample_flow(flow, mask, scale=scale)

    def forward(self, image1, image2, up_mask, delta_flow, test_mode=False):
        # Fused, lane-dense image normalization (one kernel for both images).
        image1, image2 = normalize_image_pair(image1, image2)

        coords0, coords1 = self.initialize_flow16(image1)

        # TODO(synk): up_mask / delta_flow would come from the (undefined)
        # update block; they are supplied externally so the CCMR-owned kernels
        # below are exercised.
        coords1 = coords1 + delta_flow
        flow = coords1 - coords0
        N, _, Hc, Wc = flow.shape
        scale = 2

        raw = upsample_flow_raw(flow, up_mask, scale=scale)

        upsampling_offset = (self.num_scales - 1 if self.num_scales == 4
                             else self.num_scales)
        index = 0
        n_up = upsampling_offset - index
        if n_up >= 1:
            # First upflow2 fused with the convex-upsample pixel shuffle:
            # one resize kernel, no HBM transpose of the upsampled flow.
            flow_up = _resize_from_raw(raw, scale, 2 * scale * Hc,
                                       2 * scale * Wc, (2.0, 2.0))
            for _ in range(n_up - 1):
                flow_up = upflow2(flow_up)
        else:
            flow_up = _resize_from_raw(raw, scale, scale * Hc, scale * Wc,
                                       (1.0, 1.0))

        if test_mode:
            flow_low = downflow(flow_up, factor=0.0625)
            return flow_low, flow_up
        return [flow_up]


# ----------------------------------------------------------------------------
if __name__ == "__main__":
    key = jax.random.PRNGKey(0)
    k1, k2, k3, k4 = jax.random.split(key, 4)

    N, C, H, W = 2, 3, 64, 64
    image1 = jax.random.randint(k1, (N, C, H, W), 0, 256,
                                dtype=jnp.int32).astype(jnp.uint8)
    image2 = jax.random.randint(k2, (N, C, H, W), 0, 256,
                                dtype=jnp.int32).astype(jnp.uint8)

    h16, w16 = H // 16, W // 16
    scale = 2
    up_mask = jax.random.normal(k3, (N, 9 * scale * scale, h16, w16), jnp.float32)
    delta_flow = 0.5 * jax.random.normal(k4, (N, 2, h16, w16), jnp.float32)

    model = CCMRPallas("ccmr")
    flow_low, flow_up = model.forward(image1, image2, up_mask, delta_flow,
                                      test_mode=True)
    jax.block_until_ready((flow_low, flow_up))

    assert flow_up.shape == (N, 2, H, W), flow_up.shape
    assert flow_low.shape == (N, 2, H // 16, W // 16), flow_low.shape
    assert bool(jnp.all(jnp.isfinite(flow_up)))
    assert bool(jnp.all(jnp.isfinite(flow_low)))

    # ---- silent pure-JAX reference checks --------------------------------
    img1n, _ = normalize_image_pair(image1, image2)
    ref_norm = 2.0 * (image1.astype(jnp.float32) / 255.0) - 1.0
    assert bool(jnp.allclose(img1n, ref_norm, atol=1e-5))

    def _ref_upsample(fl, mk, s):
        n, _, h, w = fl.shape
        m = jax.nn.softmax(mk.reshape(n, 9, s * s, h, w), axis=1)
        fp = jnp.pad(float(s) * fl, ((0, 0), (0, 0), (1, 1), (1, 1)))
        out = jnp.zeros((n, 2, s * s, h, w), jnp.float32)
        for ky in range(3):
            for kx in range(3):
                out = out + (m[:, ky * 3 + kx, None]
                             * fp[:, :, None, ky:ky + h, kx:kx + w])
        out = out.reshape(n, 2, s, s, h, w).transpose(0, 1, 4, 2, 5, 3)
        return out.reshape(n, 2, s * h, s * w)

    def _ref_resize(x, nh, nw, scs):
        wy = _bilinear_matrix(nh, x.shape[2])
        wx = _bilinear_matrix(nw, x.shape[3])
        y = jnp.einsum("Yh,nchw->ncYw", wy, x, precision="highest")
        y = jnp.einsum("Xw,ncYw->ncYX", wx, y, precision="highest")
        return y * jnp.asarray(scs, jnp.float32)[None, :, None, None]

    ref = _ref_upsample(delta_flow, up_mask, scale)
    for _ in range(3):
        ref = _ref_resize(ref, 2 * ref.shape[2], 2 * ref.shape[3], (2.0, 2.0))
    ref_low = _ref_resize(ref, h16, w16, (h16 / H, w16 / W))
    assert bool(jnp.allclose(flow_up, ref, atol=5e-3, rtol=5e-3))
    assert bool(jnp.allclose(flow_low, ref_low, atol=5e-3, rtol=5e-3))

    print("KERNEL_OK")
</pallas_src>

<mosaic_0001>
module attributes {stable_mosaic.version = 11 : i64} {
  func.func @_normalize_kernel(%arg0: i32, %arg1: memref<48x512xi8, #tpu.memory_space<vmem>>, %arg2: memref<48x512xi8, #tpu.memory_space<vmem>>, %arg3: memref<48x512xf32, #tpu.memory_space<vmem>>, %arg4: memref<48x512xf32, #tpu.memory_space<vmem>>) attributes {dimension_semantics = [#tpu.dimension_semantics<parallel>], iteration_bounds = array<i64: 1>, scalar_prefetch = 0 : i64, scratch_operands = 0 : i64, tpu.core_type = #tpu.core_type<tc>, window_params = [{transform_indices = @transform_0, window_bounds = array<i64: 48, 512>}, {transform_indices = @transform_1, window_bounds = array<i64: 48, 512>}, {transform_indices = @transform_2, window_bounds = array<i64: 48, 512>}, {transform_indices = @transform_3, window_bounds = array<i64: 48, 512>}]} {
    %c0 = arith.constant 0 : index
    %c0_0 = arith.constant 0 : index
    %0 = vector.load %arg1[%c0, %c0_0] : memref<48x512xi8, #tpu.memory_space<vmem>>, vector<48x512xi8>
    %1 = arith.uitofp %0 : vector<48x512xi8> to vector<48x512xf32>
    %cst = arith.constant 0.00784313772 : f32
    %2 = vector.broadcast %cst : f32 to vector<48x512xf32>
    %3 = arith.mulf %1, %2 : vector<48x512xf32>
    %cst_1 = arith.constant 1.000000e+00 : f32
    %4 = vector.broadcast %cst_1 : f32 to vector<48x512xf32>
    %5 = arith.subf %3, %4 : vector<48x512xf32>
    %c0_2 = arith.constant 0 : index
    %c0_3 = arith.constant 0 : index
    %6 = vector.load %arg3[%c0_2, %c0_3] : memref<48x512xf32, #tpu.memory_space<vmem>>, vector<48x512xf32>
    tpu.vector_store %arg3[%c0_2, %c0_3], %5 {strides = array<i32>} : memref<48x512xf32, #tpu.memory_space<vmem>>, vector<48x512xf32>,
    %c0_4 = arith.constant 0 : index
    %c0_5 = arith.constant 0 : index
    %7 = vector.load %arg2[%c0_4, %c0_5] : memref<48x512xi8, #tpu.memory_space<vmem>>, vector<48x512xi8>
    %8 = arith.uitofp %7 : vector<48x512xi8> to vector<48x512xf32>
    %cst_6 = arith.constant 0.00784313772 : f32
    %9 = vector.broadcast %cst_6 : f32 to vector<48x512xf32>
    %10 = arith.mulf %8, %9 : vector<48x512xf32>
    %cst_7 = arith.constant 1.000000e+00 : f32
    %11 = vector.broadcast %cst_7 : f32 to vector<48x512xf32>
    %12 = arith.subf %10, %11 : vector<48x512xf32>
    %c0_8 = arith.constant 0 : index
    %c0_9 = arith.constant 0 : index
    %13 = vector.load %arg4[%c0_8, %c0_9] : memref<48x512xf32, #tpu.memory_space<vmem>>, vector<48x512xf32>
    tpu.vector_store %arg4[%c0_8, %c0_9], %12 {strides = array<i32>} : memref<48x512xf32, #tpu.memory_space<vmem>>, vector<48x512xf32>,
    return
  }
  func.func @transform_0(%arg0: i32) -> (i32, i32) {
    %c0_i32 = arith.constant 0 : i32
    %c0_i32_0 = arith.constant 0 : i32
    return %arg0, %c0_i32 : i32, i32
  }
  func.func @transform_1(%arg0: i32) -> (i32, i32) {
    %c0_i32 = arith.constant 0 : i32
    %c0_i32_0 = arith.constant 0 : i32
    return %arg0, %c0_i32 : i32, i32
  }
  func.func @transform_2(%arg0: i32) -> (i32, i32) {
    %c0_i32 = arith.constant 0 : i32
    %c0_i32_0 = arith.constant 0 : i32
    return %arg0, %c0_i32 : i32, i32
  }
  func.func @transform_3(%arg0: i32) -> (i32, i32) {
    %c0_i32 = arith.constant 0 : i32
    %c0_i32_0 = arith.constant 0 : i32
    return %arg0, %c0_i32 : i32, i32
  }
}

</mosaic_0001>

<llo_original>
// kernel: tpu_custom_call.1
$region0: #{tpu_custom_call.1}
  #allocation0 [shape = 'u32[]', space=smem, size = 0x4, offset = 0x4, fixed_abs, tag = 'smem constant byte address 0x4 - core index']
  #allocation1 [shape = 'u32[144,128]{1,0:T(1,128)}', space=vmem, size = 0x12000, scoped, tag = 'internal scratch']
  %s0 = inlined_call_operand.hbm [shape: u8[48,512], index: 0, kind: input, shape index: {}]
  %s1 = inlined_call_operand.hbm [shape: u8[48,512], index: 1, kind: input, shape index: {}]
  %s2 = inlined_call_operand.hbm [shape: f32[48,512], index: 2, kind: output, shape index: {0}]
  %s3 = inlined_call_operand.hbm [shape: f32[48,512], index: 3, kind: output, shape index: {1}]
  %4 = xla_tuple %s2, %s3
  %s5 = sld [smem:[#allocation0]]
  $region34: #{tpu_custom_call.1} parent=0
    _
  %s7 = ssub.s32 1, %s5
  %s8 = scalar_select 0, %s7, %s5
  $region1: #{tpu_custom_call.1} parent=0
    #allocation2 [shape = 'u8[24576]{0}', space=vmem, size = 0x6000, scoped, tag = 'input window, operand 0, single buffered']
    #allocation3 [shape = 's32[1]{0}', space=sflag, size = 0x4, scoped, tag = 'scoped memory for tpu_custom_call.1']
    #allocation4 [shape = 's32[1]{0}', space=sflag, size = 0x4, scoped, tag = 'scoped memory for tpu_custom_call.1']
    #allocation5 [shape = 'u8[24576]{0}', space=vmem, size = 0x6000, scoped, tag = 'input window, operand 1, single buffered']
    #allocation6 [shape = 's32[1]{0}', space=sflag, size = 0x4, scoped, tag = 'scoped memory for tpu_custom_call.1']
    #allocation7 [shape = 'u8[98304]{0}', space=vmem, size = 0x18000, scoped, tag = 'output window, operand 0, single buffered']
    #allocation8 [shape = 'u8[98304]{0}', space=vmem, size = 0x18000, scoped, tag = 'output window, operand 1, single buffered']
    #allocation9 [shape = 's32[1]{0}', space=sflag, size = 0x4, scoped, tag = 'scoped memory for tpu_custom_call.1']
    %9 = vsyncpa [#allocation3], 0
    %10 = vsyncpa [#allocation6], 0
    %11 = vsyncpa [#allocation4], 0
    %12 = vsyncpa [#allocation9], 0
    // Predicated region
    $region2: #{tpu_custom_call.1} parent=1 // pred_check
      _
    $region3: #{tpu_custom_call.1} parent=1 // pred_check_branch
      %14 = sbr.rel (0) target = $region5
    $region4: #{tpu_custom_call.1} parent=1 // pred_region
      %s16 = ssub.s32 768, 768
      %17 = vsyncadd [#allocation3], %s16
      %s18 = sshll.u32 [#allocation2], 4
      %s19 = int_to_ptr.vmem [resolvable:$true] %s18
      %24 = dma.hbm_to_vmem [thread:$0]  %s0, 768, %s19, [#allocation3], 128, 128, 8
    $region5: #{tpu_custom_call.1} parent=1 // pred_fallthru
      _
    // Predicated region
    $region6: #{tpu_custom_call.1} parent=1 // pred_check
      _
    $region7: #{tpu_custom_call.1} parent=1 // pred_check_branch
      %26 = sbr.rel (0) target = $region9
    $region8: #{tpu_custom_call.1} parent=1 // pred_region
      %s28 = ssub.s32 768, 768
      %29 = vsyncadd [#allocation6], %s28
      %s30 = sshll.u32 [#allocation5], 4
      %s31 = int_to_ptr.vmem [resolvable:$true] %s30
      %36 = dma.hbm_to_vmem [thread:$0]  %s1, 768, %s31, [#allocation6], 128, 128, 8
    $region9: #{tpu_custom_call.1} parent=1 // pred_fallthru
      _
    // Predicated region
    $region10: #{tpu_custom_call.1} parent=1 // pred_check
      _
    $region11: #{tpu_custom_call.1} parent=1 // pred_check_branch
      %38 = sbr.rel (0) target = $region13
    $region12: #{tpu_custom_call.1} parent=1 // pred_region
      %39 = dma.done [#allocation3], 768
    $region13: #{tpu_custom_call.1} parent=1 // pred_fallthru
      _
    // Predicated region
    $region14: #{tpu_custom_call.1} parent=1 // pred_check
      _
    $region15: #{tpu_custom_call.1} parent=1 // pred_check_branch
      %41 = sbr.rel (0) target = $region17
    $region16: #{tpu_custom_call.1} parent=1 // pred_region
      %42 = dma.done [#allocation6], 768
    $region17: #{tpu_custom_call.1} parent=1 // pred_fallthru
      _
    %v43 = vld [vmem:[#allocation2] sm:$0xff]
    %v44 = vld [vmem:[#allocation2 + $0x8] sm:$0xff]
    %v45 = vld [vmem:[#allocation2 + $0x10] sm:$0xff]
    %v46 = vld [vmem:[#allocation2 + $0x18] sm:$0xff]
    %v47 = vld [vmem:[#allocation2 + $0x20] sm:$0xff]
    %v48 = vld [vmem:[#allocation2 + $0x28] sm:$0xff]
    %v49 = vunpack.c.0.s8 %v43
    %v50 = vunpack.c.1.s8 %v43
    %v51 = vunpack.c.2.s8 %v43
    %v52 = vunpack.c.3.s8 %v43
    %v53 = vunpack.c.0.s8 %v44
    %v54 = vunpack.c.1.s8 %v44
    %v55 = vunpack.c.2.s8 %v44
    %v56 = vunpack.c.3.s8 %v44
    %v57 = vunpack.c.0.s8 %v45
    %v58 = vunpack.c.1.s8 %v45
    %v59 = vunpack.c.2.s8 %v45
    %v60 = vunpack.c.3.s8 %v45
    %v61 = vunpack.c.0.s8 %v46
    %v62 = vunpack.c.1.s8 %v46
    %v63 = vunpack.c.2.s8 %v46
    %v64 = vunpack.c.3.s8 %v46
    %v65 = vunpack.c.0.s8 %v47
    %v66 = vunpack.c.1.s8 %v47
    %v67 = vunpack.c.2.s8 %v47
    %v68 = vunpack.c.3.s8 %v47
    %v69 = vunpack.c.0.s8 %v48
    %v70 = vunpack.c.1.s8 %v48
    %v71 = vunpack.c.2.s8 %v48
    %v72 = vunpack.c.3.s8 %v48
    %v73 = vand.u32 %v49, 255
    %v74 = vand.u32 %v50, 255
    %v75 = vand.u32 %v51, 255
    %v76 = vand.u32 %v52, 255
    %v77 = vand.u32 %v53, 255
    %v78 = vand.u32 %v54, 255
    %v79 = vand.u32 %v55, 255
    %v80 = vand.u32 %v56, 255
    %v81 = vand.u32 %v57, 255
    %v82 = vand.u32 %v58, 255
    %v83 = vand.u32 %v59, 255
    %v84 = vand.u32 %v60, 255
    %v85 = vand.u32 %v61, 255
    %v86 = vand.u32 %v62, 255
    %v87 = vand.u32 %v63, 255
    %v88 = vand.u32 %v64, 255
    %v89 = vand.u32 %v65, 255
    %v90 = vand.u32 %v66, 255
    %v91 = vand.u32 %v67, 255
    %v92 = vand.u32 %v68, 255
    %v93 = vand.u32 %v69, 255
    %v94 = vand.u32 %v70, 255
    %v95 = vand.u32 %v71, 255
    %v96 = vand.u32 %v72, 255
    %v97 = vcvt.s32.f32 %v73
    %v98 = vcvt.s32.f32 %v74
    %v99 = vcvt.s32.f32 %v75
    %v100 = vcvt.s32.f32 %v76
    %v101 = vcvt.s32.f32 %v77
    %v102 = vcvt.s32.f32 %v78
    %v103 = vcvt.s32.f32 %v79
    %v104 = vcvt.s32.f32 %v80
    %v105 = vcvt.s32.f32 %v81
    %v106 = vcvt.s32.f32 %v82
    %v107 = vcvt.s32.f32 %v83
    %v108 = vcvt.s32.f32 %v84
    %v109 = vcvt.s32.f32 %v85
    %v110 = vcvt.s32.f32 %v86
    %v111 = vcvt.s32.f32 %v87
    %v112 = vcvt.s32.f32 %v88
    %v113 = vcvt.s32.f32 %v89
    %v114 = vcvt.s32.f32 %v90
    %v115 = vcvt.s32.f32 %v91
    %v116 = vcvt.s32.f32 %v92
    %v117 = vcvt.s32.f32 %v93
    %v118 = vcvt.s32.f32 %v94
    %v119 = vcvt.s32.f32 %v95
    %v120 = vcvt.s32.f32 %v96
    %v121 = vmul.f32 %v97, 0.007843138
    %v122 = vmul.f32 %v98, 0.007843138
    %v123 = vmul.f32 %v99, 0.007843138
    %v124 = vmul.f32 %v100, 0.007843138
    %v125 = vmul.f32 %v101, 0.007843138
    %v126 = vmul.f32 %v102, 0.007843138
    %v127 = vmul.f32 %v103, 0.007843138
    %v128 = vmul.f32 %v104, 0.007843138
    %v129 = vmul.f32 %v105, 0.007843138
    %v130 = vmul.f32 %v106, 0.007843138
    %v131 = vmul.f32 %v107, 0.007843138
    %v132 = vmul.f32 %v108, 0.007843138
    %v133 = vmul.f32 %v109, 0.007843138
    %v134 = vmul.f32 %v110, 0.007843138
    %v135 = vmul.f32 %v111, 0.007843138
    %v136 = vmul.f32 %v112, 0.007843138
    %v137 = vmul.f32 %v113, 0.007843138
    %v138 = vmul.f32 %v114, 0.007843138
    %v139 = vmul.f32 %v115, 0.007843138
    %v140 = vmul.f32 %v116, 0.007843138
    %v141 = vmul.f32 %v117, 0.007843138
    %v142 = vmul.f32 %v118, 0.007843138
    %v143 = vmul.f32 %v119, 0.007843138
    %v144 = vmul.f32 %v120, 0.007843138
    %v145 = vsub.f32 %v121, 1.0
    %v146 = vsub.f32 %v122, 1.0
    %v147 = vsub.f32 %v123, 1.0
    %v148 = vsub.f32 %v124, 1.0
    %v149 = vsub.f32 %v125, 1.0
    %v150 = vsub.f32 %v126, 1.0
    %v151 = vsub.f32 %v127, 1.0
    %v152 = vsub.f32 %v128, 1.0
    %v153 = vsub.f32 %v129, 1.0
    %v154 = vsub.f32 %v130, 1.0
    %v155 = vsub.f32 %v131, 1.0
    %v156 = vsub.f32 %v132, 1.0
    %v157 = vsub.f32 %v133, 1.0
    %v158 = vsub.f32 %v134, 1.0
    %v159 = vsub.f32 %v135, 1.0
    %v160 = vsub.f32 %v136, 1.0
    %v161 = vsub.f32 %v137, 1.0
    %v162 = vsub.f32 %v138, 1.0
    %v163 = vsub.f32 %v139, 1.0
    %v164 = vsub.f32 %v140, 1.0
    %v165 = vsub.f32 %v141, 1.0
    %v166 = vsub.f32 %v142, 1.0
    %v167 = vsub.f32 %v143, 1.0
    %v168 = vsub.f32 %v144, 1.0
    %169 = vst [vmem:[#allocation7] sm:$0xff] %v145
    %170 = vst [vmem:[#allocation7 + $0x8] sm:$0xff] %v146
    %171 = vst [vmem:[#allocation7 + $0x10] sm:$0xff] %v147
    %172 = vst [vmem:[#allocation7 + $0x18] sm:$0xff] %v148
    %173 = vst [vmem:[#allocation7 + $0x20] sm:$0xff] %v149
    %174 = vst [vmem:[#allocation7 + $0x28] sm:$0xff] %v150
    %175 = vst [vmem:[#allocation7 + $0x30] sm:$0xff] %v151
    %176 = vst [vmem:[#allocation7 + $0x38] sm:$0xff] %v152
    %177 = vst [vmem:[#allocation7 + $0x40] sm:$0xff] %v153
    %178 = vst [vmem:[#allocation7 + $0x48] sm:$0xff] %v154
    %179 = vst [vmem:[#allocation7 + $0x50] sm:$0xff] %v155
    %180 = vst [vmem:[#allocation7 + $0x58] sm:$0xff] %v156
    %181 = vst [vmem:[#allocation7 + $0x60] sm:$0xff] %v157
    %182 = vst [vmem:[#allocation7 + $0x68] sm:$0xff] %v158
    %183 = vst [vmem:[#allocation7 + $0x70] sm:$0xff] %v159
    %184 = vst [vmem:[#allocation7 + $0x78] sm:$0xff] %v160
    %185 = vst [vmem:[#allocation7 + $0x80] sm:$0xff] %v161
    %186 = vst [vmem:[#allocation7 + $0x88] sm:$0xff] %v162
    %187 = vst [vmem:[#allocation7 + $0x90] sm:$0xff] %v163
    %188 = vst [vmem:[#allocation7 + $0x98] sm:$0xff] %v164
    %189 = vst [vmem:[#allocation7 + $0xa0] sm:$0xff] %v165
    %190 = vst [vmem:[#allocation7 + $0xa8] sm:$0xff] %v166
    %191 = vst [vmem:[#allocation7 + $0xb0] sm:$0xff] %v167
    %192 = vst [vmem:[#allocation7 + $0xb8] sm:$0xff] %v168
    %v193 = vld [vmem:[#allocation5] sm:$0xff]
    %v194 = vld [vmem:[#allocation5 + $0x8] sm:$0xff]
    %v195 = vld [vmem:[#allocation5 + $0x10] sm:$0xff]
    %v196 = vld [vmem:[#allocation5 + $0x18] sm:$0xff]
    %v197 = vld [vmem:[#allocation5 + $0x20] sm:$0xff]
    %v198 = vld [vmem:[#allocation5 + $0x28] sm:$0xff]
    %v199 = vunpack.c.0.s8 %v193
    %v200 = vunpack.c.1.s8 %v193
    %v201 = vunpack.c.2.s8 %v193
    %v202 = vunpack.c.3.s8 %v193
    %v203 = vunpack.c.0.s8 %v194
    %v204 = vunpack.c.1.s8 %v194
    %v205 = vunpack.c.2.s8 %v194
    %v206 = vunpack.c.3.s8 %v194
    %v207 = vunpack.c.0.s8 %v195
    %v208 = vunpack.c.1.s8 %v195
    %v209 = vunpack.c.2.s8 %v195
    %v210 = vunpack.c.3.s8 %v195
    %v211 = vunpack.c.0.s8 %v196
    %v212 = vunpack.c.1.s8 %v196
    %v213 = vunpack.c.2.s8 %v196
    %v214 = vunpack.c.3.s8 %v196
    %v215 = vunpack.c.0.s8 %v197
    %v216 = vunpack.c.1.s8 %v197
    %v217 = vunpack.c.2.s8 %v197
    %v218 = vunpack.c.3.s8 %v197
    %v219 = vunpack.c.0.s8 %v198
    %v220 = vunpack.c.1.s8 %v198
    %v221 = vunpack.c.2.s8 %v198
    %v222 = vunpack.c.3.s8 %v198
    %v223 = vand.u32 %v199, 255
    %v224 = vand.u32 %v200, 255
    %v225 = vand.u32 %v201, 255
    %v226 = vand.u32 %v202, 255
    %v227 = vand.u32 %v203, 255
    %v228 = vand.u32 %v204, 255
    %v229 = vand.u32 %v205, 255
    %v230 = vand.u32 %v206, 255
    %v231 = vand.u32 %v207, 255
    %v232 = vand.u32 %v208, 255
    %v233 = vand.u32 %v209, 255
    %v234 = vand.u32 %v210, 255
    %v235 = vand.u32 %v211, 255
    %v236 = vand.u32 %v212, 255
    %v237 = vand.u32 %v213, 255
    %v238 = vand.u32 %v214, 255
    %v239 = vand.u32 %v215, 255
    %v240 = vand.u32 %v216, 255
    %v241 = vand.u32 %v217, 255
    %v242 = vand.u32 %v218, 255
    %v243 = vand.u32 %v219, 255
    %v244 = vand.u32 %v220, 255
    %v245 = vand.u32 %v221, 255
    %v246 = vand.u32 %v222, 255
    %v247 = vcvt.s32.f32 %v223
    %v248 = vcvt.s32.f32 %v224
    %v249 = vcvt.s32.f32 %v225
    %v250 = vcvt.s32.f32 %v226
    %v251 = vcvt.s32.f32 %v227
    %v252 = vcvt.s32.f32 %v228
    %v253 = vcvt.s32.f32 %v229
    %v254 = vcvt.s32.f32 %v230
    %v255 = vcvt.s32.f32 %v231
    %v256 = vcvt.s32.f32 %v232
    %v257 = vcvt.s32.f32 %v233
    %v258 = vcvt.s32.f32 %v234
    %v259 = vcvt.s32.f32 %v235
    %v260 = vcvt.s32.f32 %v236
    %v261 = vcvt.s32.f32 %v237
    %v262 = vcvt.s32.f32 %v238
    %v263 = vcvt.s32.f32 %v239
    %v264 = vcvt.s32.f32 %v240
    %v265 = vcvt.s32.f32 %v241
    %v266 = vcvt.s32.f32 %v242
    %v267 = vcvt.s32.f32 %v243
    %v268 = vcvt.s32.f32 %v244
    %v269 = vcvt.s32.f32 %v245
    %v270 = vcvt.s32.f32 %v246
    %v271 = vmul.f32 %v247, 0.007843138
    %v272 = vmul.f32 %v248, 0.007843138
    %v273 = vmul.f32 %v249, 0.007843138
    %v274 = vmul.f32 %v250, 0.007843138
    %v275 = vmul.f32 %v251, 0.007843138
    %v276 = vmul.f32 %v252, 0.007843138
    %v277 = vmul.f32 %v253, 0.007843138
    %v278 = vmul.f32 %v254, 0.007843138
    %v279 = vmul.f32 %v255, 0.007843138
    %v280 = vmul.f32 %v256, 0.007843138
    %v281 = vmul.f32 %v257, 0.007843138
    %v282 = vmul.f32 %v258, 0.007843138
    %v283 = vmul.f32 %v259, 0.007843138
    %v284 = vmul.f32 %v260, 0.007843138
    %v285 = vmul.f32 %v261, 0.007843138
    %v286 = vmul.f32 %v262, 0.007843138
    %v287 = vmul.f32 %v263, 0.007843138
    %v288 = vmul.f32 %v264, 0.007843138
    %v289 = vmul.f32 %v265, 0.007843138
    %v290 = vmul.f32 %v266, 0.007843138
    %v291 = vmul.f32 %v267, 0.007843138
    %v292 = vmul.f32 %v268, 0.007843138
    %v293 = vmul.f32 %v269, 0.007843138
    %v294 = vmul.f32 %v270, 0.007843138
    %v295 = vsub.f32 %v271, 1.0
    %v296 = vsub.f32 %v272, 1.0
    %v297 = vsub.f32 %v273, 1.0
    %v298 = vsub.f32 %v274, 1.0
    %v299 = vsub.f32 %v275, 1.0
    %v300 = vsub.f32 %v276, 1.0
    %v301 = vsub.f32 %v277, 1.0
    %v302 = vsub.f32 %v278, 1.0
    %v303 = vsub.f32 %v279, 1.0
    %v304 = vsub.f32 %v280, 1.0
    %v305 = vsub.f32 %v281, 1.0
    %v306 = vsub.f32 %v282, 1.0
    %v307 = vsub.f32 %v283, 1.0
    %v308 = vsub.f32 %v284, 1.0
    %v309 = vsub.f32 %v285, 1.0
    %v310 = vsub.f32 %v286, 1.0
    %v311 = vsub.f32 %v287, 1.0
    %v312 = vsub.f32 %v288, 1.0
    %v313 = vsub.f32 %v289, 1.0
    %v314 = vsub.f32 %v290, 1.0
    %v315 = vsub.f32 %v291, 1.0
    %v316 = vsub.f32 %v292, 1.0
    %v317 = vsub.f32 %v293, 1.0
    %v318 = vsub.f32 %v294, 1.0
    %319 = vst [vmem:[#allocation8] sm:$0xff] %v295
    %320 = vst [vmem:[#allocation8 + $0x8] sm:$0xff] %v296
    %321 = vst [vmem:[#allocation8 + $0x10] sm:$0xff] %v297
    %322 = vst [vmem:[#allocation8 + $0x18] sm:$0xff] %v298
    %323 = vst [vmem:[#allocation8 + $0x20] sm:$0xff] %v299
    %324 = vst [vmem:[#allocation8 + $0x28] sm:$0xff] %v300
    %325 = vst [vmem:[#allocation8 + $0x30] sm:$0xff] %v301
    %326 = vst [vmem:[#allocation8 + $0x38] sm:$0xff] %v302
    %327 = vst [vmem:[#allocation8 + $0x40] sm:$0xff] %v303
    %328 = vst [vmem:[#allocation8 + $0x48] sm:$0xff] %v304
    %329 = vst [vmem:[#allocation8 + $0x50] sm:$0xff] %v305
    %330 = vst [vmem:[#allocation8 + $0x58] sm:$0xff] %v306
    %331 = vst [vmem:[#allocation8 + $0x60] sm:$0xff] %v307
    %332 = vst [vmem:[#allocation8 + $0x68] sm:$0xff] %v308
    %333 = vst [vmem:[#allocation8 + $0x70] sm:$0xff] %v309
    %334 = vst [vmem:[#allocation8 + $0x78] sm:$0xff] %v310
    %335 = vst [vmem:[#allocation8 + $0x80] sm:$0xff] %v311
    %336 = vst [vmem:[#allocation8 + $0x88] sm:$0xff] %v312
    %337 = vst [vmem:[#allocation8 + $0x90] sm:$0xff] %v313
    %338 = vst [vmem:[#allocation8 + $0x98] sm:$0xff] %v314
    %339 = vst [vmem:[#allocation8 + $0xa0] sm:$0xff] %v315
    %340 = vst [vmem:[#allocation8 + $0xa8] sm:$0xff] %v316
    %341 = vst [vmem:[#allocation8 + $0xb0] sm:$0xff] %v317
    %342 = vst [vmem:[#allocation8 + $0xb8] sm:$0xff] %v318
    // Predicated region
    $region18: #{tpu_custom_call.1} parent=1 // pred_check
      _
    $region19: #{tpu_custom_call.1} parent=1 // pred_check_branch
      %344 = sbr.rel (0) target = $region21
    $region20: #{tpu_custom_call.1} parent=1 // pred_region
      %s346 = ssub.s32 3072, 3072
      %347 = vsyncadd [#allocation4], %s346
      %s348 = sshll.u32 [#allocation7], 4
      %s349 = int_to_ptr.vmem [resolvable:$true] %s348
      %354 = dma.vmem_to_hbm [thread:$0]  %s349, 3072, %s2, [#allocation4], 512, 512, 32
    $region21: #{tpu_custom_call.1} parent=1 // pred_fallthru
      _
    // Predicated region
    $region22: #{tpu_custom_call.1} parent=1 // pred_check
      _
    $region23: #{tpu_custom_call.1} parent=1 // pred_check_branch
      %356 = sbr.rel (0) target = $region25
    $region24: #{tpu_custom_call.1} parent=1 // pred_region
      %s358 = ssub.s32 3072, 3072
      %359 = vsyncadd [#allocation9], %s358
      %s360 = sshll.u32 [#allocation8], 4
      %s361 = int_to_ptr.vmem [resolvable:$true] %s360
      %366 = dma.vmem_to_hbm [thread:$0]  %s361, 3072, %s3, [#allocation9], 512, 512, 32
    $region25: #{tpu_custom_call.1} parent=1 // pred_fallthru
      _
    // Predicated region
    $region26: #{tpu_custom_call.1} parent=1 // pred_check
      _
    $region27: #{tpu_custom_call.1} parent=1 // pred_check_branch
      %368 = sbr.rel (0) target = $region29
    $region28: #{tpu_custom_call.1} parent=1 // pred_region
      %369 = dma.done [#allocation4], 3072
    $region29: #{tpu_custom_call.1} parent=1 // pred_fallthru
      _
    // Predicated region
    $region30: #{tpu_custom_call.1} parent=1 // pred_check
      _
    $region31: #{tpu_custom_call.1} parent=1 // pred_check_branch
      %371 = sbr.rel (0) target = $region33
    $region32: #{tpu_custom_call.1} parent=1 // pred_region
      %372 = dma.done [#allocation9], 3072
    $region33: #{tpu_custom_call.1} parent=1 // pred_fallthru
      _
    %373 = vsyncpa [#allocation3], 1
    %374 = vsyncpa [#allocation6], 1
    %375 = vsyncpa [#allocation4], 1
    %376 = vsyncpa [#allocation9], 1

</llo_original>
